<compile_context>
chip_gen: v7x
topology: tpu7x:2x2x1
jax: 0.10.0
libtpu: 0.0.40
codegen_flags: <defaults>
</compile_context>

<pallas_src>
import jax
import jax.numpy as jnp
from jax.experimental import pallas as pl
from jax.experimental.pallas import tpu as pltpu


def _cond_entropy_rows_kernel(x_ref, rows_ref):
    # x_ref: (TB, C) logits tile in VMEM; rows_ref: (TB, 1) per-row sum_j p*log p.
    x = x_ref[...].astype(jnp.float32)
    m = jnp.max(x, axis=1, keepdims=True)              # (TB, 1) lane reduce
    z = x - m                                          # (TB, C)
    e = jnp.exp(z)                                     # EUP
    s = jnp.sum(e, axis=1, keepdims=True)              # (TB, 1)
    sum_ez = jnp.sum(e * z, axis=1, keepdims=True)     # (TB, 1)
    # sum_j p_j * log p_j = (sum_j e_j * z_j) / s - log(s)
    rows_ref[...] = sum_ez * pl.reciprocal(s, approx=True) - jnp.log(s)


def _choose_block_rows(batch, n_classes):
    # Keep each (double-buffered) f32 input tile around <= 4 MiB so the two
    # buffers fit comfortably under the scoped VMEM limit on every TPU gen
    # (including v7x: 64 MiB physical / 32 MiB scoped default).
    per_buffer_bytes = 4 * 1024 * 1024
    tb = max(8, per_buffer_bytes // (max(n_classes, 1) * 4))
    tb = min(tb, 1024)
    tb -= tb % 8
    if batch <= tb:
        return batch  # one block covering the whole batch, no padding needed
    return tb


def conditional_entropy_loss(x, block_rows=None):
    """x: (B, C) logits (f32 or bf16). Returns scalar f32 loss."""
    x = jnp.asarray(x)
    batch, n_classes = x.shape
    tb = _choose_block_rows(batch, n_classes) if block_rows is None else block_rows
    num_blocks = pl.cdiv(batch, tb)
    batch_pad = num_blocks * tb
    if batch_pad != batch:
        # Padded rows are computed but sliced off before the final mean, so
        # they cannot bias the result.
        x = jnp.pad(x, ((0, batch_pad - batch), (0, 0)))

    rows = pl.pallas_call(
        _cond_entropy_rows_kernel,
        out_shape=jax.ShapeDtypeStruct((batch_pad, 1), jnp.float32),
        grid=(num_blocks,),
        in_specs=[pl.BlockSpec((tb, n_classes), lambda i: (i, 0))],
        out_specs=pl.BlockSpec((tb, 1), lambda i: (i, 0)),
        compiler_params=pltpu.CompilerParams(
            dimension_semantics=("parallel",),
            vmem_limit_bytes=32 * 1024 * 1024,
        ),
    )(x)

    # -mean over the true batch (exclude padded rows); true-B divide, not a
    # mean of per-block means.
    return -jnp.sum(rows[:batch, 0]) / batch


def _reference(x):
    # Pure-JAX reference mirroring the PyTorch module.
    p = jax.nn.softmax(x, axis=1)
    lp = jax.nn.log_softmax(x, axis=1)
    b = jnp.sum(p * lp, axis=1)
    return -1.0 * jnp.mean(b, axis=0)


if __name__ == "__main__":
    key = jax.random.PRNGKey(0)
    k1, k2 = jax.random.split(key)

    # Case 1: small batch, single block (no padding).
    B1, C1 = 8, 32
    x1 = jax.random.normal(k1, (B1, C1), dtype=jnp.float32)
    out1 = jax.block_until_ready(conditional_entropy_loss(x1))
    ref1 = _reference(x1)
    assert jnp.allclose(out1, ref1, rtol=1e-3, atol=1e-3), (out1, ref1)

    # Case 2: exercises the multi-block grid + batch-padding path (B % TB != 0).
    B2, C2 = 20, 32
    x2 = jax.random.normal(k2, (B2, C2), dtype=jnp.float32)
    out2 = jax.block_until_ready(conditional_entropy_loss(x2, block_rows=8))
    ref2 = _reference(x2)
    assert jnp.allclose(out2, ref2, rtol=1e-3, atol=1e-3), (out2, ref2)

    print("KERNEL_OK")
</pallas_src>

<mosaic_0001>
module attributes {stable_mosaic.version = 11 : i64} {
  func.func @_cond_entropy_rows_kernel(%arg0: i32, %arg1: memref<8x32xf32, #tpu.memory_space<vmem>>, %arg2: memref<8x1xf32, #tpu.memory_space<vmem>>) attributes {dimension_semantics = [#tpu.dimension_semantics<parallel>], iteration_bounds = array<i64: 1>, scalar_prefetch = 0 : i64, scratch_operands = 0 : i64, tpu.core_type = #tpu.core_type<tc>, window_params = [{transform_indices = @transform_0, window_bounds = array<i64: 8, 32>}, {transform_indices = @transform_1, window_bounds = array<i64: 8, 1>}]} {
    %c0 = arith.constant 0 : index
    %c0_0 = arith.constant 0 : index
    %0 = vector.load %arg1[%c0, %c0_0] : memref<8x32xf32, #tpu.memory_space<vmem>>, vector<8x32xf32>
    %cst = arith.constant dense<0xFF800000> : vector<8xf32>
    %1 = vector.multi_reduction <maximumf>, %0, %cst [1] : vector<8x32xf32> to vector<8xf32>
    %2 = vector.shape_cast %1 : vector<8xf32> to vector<8x1xf32>
    %3 = vector.broadcast %2 : vector<8x1xf32> to vector<8x32xf32>
    %4 = arith.subf %0, %3 : vector<8x32xf32>
    %5 = math.exp %4 : vector<8x32xf32>
    %cst_1 = arith.constant dense<0.000000e+00> : vector<8xf32>
    %6 = vector.multi_reduction <add>, %5, %cst_1 [1] : vector<8x32xf32> to vector<8xf32>
    %7 = vector.shape_cast %6 : vector<8xf32> to vector<8x1xf32>
    %8 = arith.mulf %5, %4 : vector<8x32xf32>
    %cst_2 = arith.constant dense<0.000000e+00> : vector<8xf32>
    %9 = vector.multi_reduction <add>, %8, %cst_2 [1] : vector<8x32xf32> to vector<8xf32>
    %10 = vector.shape_cast %9 : vector<8xf32> to vector<8x1xf32>
    %11 = tpu.reciprocal %7 {approx = true} : vector<8x1xf32> -> vector<8x1xf32>
    %12 = arith.mulf %10, %11 : vector<8x1xf32>
    %13 = math.log %7 : vector<8x1xf32>
    %14 = arith.subf %12, %13 : vector<8x1xf32>
    %c0_3 = arith.constant 0 : index
    %c0_4 = arith.constant 0 : index
    %15 = vector.load %arg2[%c0_3, %c0_4] : memref<8x1xf32, #tpu.memory_space<vmem>>, vector<8x1xf32>
    tpu.vector_store %arg2[%c0_3, %c0_4], %14 {strides = array<i32>} : memref<8x1xf32, #tpu.memory_space<vmem>>, vector<8x1xf32>,
    return
  }
  func.func @transform_0(%arg0: i32) -> (i32, i32) {
    %c0_i32 = arith.constant 0 : i32
    %c0_i32_0 = arith.constant 0 : i32
    return %arg0, %c0_i32 : i32, i32
  }
  func.func @transform_1(%arg0: i32) -> (i32, i32) {
    %c0_i32 = arith.constant 0 : i32
    %c0_i32_0 = arith.constant 0 : i32
    return %arg0, %c0_i32 : i32, i32
  }
}

</mosaic_0001>

<llo_original>
// kernel: tpu_custom_call.1
$region0: #{tpu_custom_call.1}
  #allocation0 [shape = 'u32[]', space=smem, size = 0x4, offset = 0x4, fixed_abs, tag = 'smem constant byte address 0x4 - core index']
  #allocation1 [shape = 'u32[144,128]{1,0:T(1,128)}', space=vmem, size = 0x12000, scoped, tag = 'internal scratch']
  %s0 = inlined_call_operand.hbm [shape: f32[8,32], index: 0, kind: input, shape index: {}]
  %s1 = inlined_call_operand.vmem [shape: f32[8,1], index: 1, kind: output, shape index: {}]
  %s2 = sld [smem:[#allocation0]]
  $region18: #{tpu_custom_call.1} parent=0
    _
  %s4 = ssub.s32 1, %s2
  %s5 = scalar_select 0, %s4, %s2
  $region1: #{tpu_custom_call.1} parent=0
    #allocation2 [shape = 'u8[4096]{0}', space=vmem, size = 0x1000, scoped, tag = 'input window, operand 0, single buffered']
    #allocation3 [shape = 's32[1]{0}', space=sflag, size = 0x4, scoped, tag = 'scoped memory for tpu_custom_call.1']
    %6 = vsyncpa [#allocation3], 0
    // Predicated region
    $region2: #{tpu_custom_call.1} parent=1 // pred_check
      _
    $region3: #{tpu_custom_call.1} parent=1 // pred_check_branch
      %8 = sbr.rel (0) target = $region5
    $region4: #{tpu_custom_call.1} parent=1 // pred_region
      %s10 = ssub.s32 128, 128
      %11 = vsyncadd [#allocation3], %s10
      %s13 = sshll.u32 [#allocation2], 4
      %s14 = int_to_ptr.vmem [resolvable:$true] %s13
      %16 = dma.hbm_to_vmem [thread:$0]  %s0, 128, %s14, [#allocation3]
    $region5: #{tpu_custom_call.1} parent=1 // pred_fallthru
      _
    // Predicated region
    $region6: #{tpu_custom_call.1} parent=1 // pred_check
      _
    $region7: #{tpu_custom_call.1} parent=1 // pred_check_branch
      %18 = sbr.rel (0) target = $region9
    $region8: #{tpu_custom_call.1} parent=1 // pred_region
      %19 = dma.done [#allocation3], 128
    $region9: #{tpu_custom_call.1} parent=1 // pred_fallthru
      _
    %v20 = vld [vmem:[#allocation2] sm:$0xff]
    %vm21 = vcmask 261120
    %v22 = vsel %vm21, %v20, -inf
    %23 = vmax.xlane.f32.xlu0 %v22
    %v24 = vpop.xlane.xlu0 %23
    %v25 = vsub.f32 %v20, %v24
    %v26 = vmul.f32 %v25, 1.442695
    %v27 = vpow.pop %v26
    %v28 = vsel %vm21, %v27, 0.0
    %29 = vadd.xlane.f32.xlu0 %v28
    %v30 = vpop.xlane.xlu0 %29
    %v31 = vmul.f32 %v27, %v25
    %v32 = vsel %vm21, %v31, 0.0
    %33 = vadd.xlane.f32.xlu0 %v32
    %v34 = vpop.xlane.xlu0 %33
    %v35 = vrcp.pop %v30
    %v36 = vmul.f32 %v34, %v35
    %v37 = vlog2.pop %v30
    %v38 = vmul.f32 %v37, 0.6931472
    %v39 = vsub.f32 %v36, %v38
    %vm40 = vcmask 7168
    %41 = vst.msk [vmem:[%s1] sm:$0xff] %vm40, %v39
    // Predicated region
    $region10: #{tpu_custom_call.1} parent=1 // pred_check
      _
    $region11: #{tpu_custom_call.1} parent=1 // pred_check_branch
      %43 = sbr.rel (0) target = $region13
    $region12: #{tpu_custom_call.1} parent=1 // pred_region
      _
    $region13: #{tpu_custom_call.1} parent=1 // pred_fallthru
      _
    // Predicated region
    $region14: #{tpu_custom_call.1} parent=1 // pred_check
      _
    $region15: #{tpu_custom_call.1} parent=1 // pred_check_branch
      %45 = sbr.rel (0) target = $region17
    $region16: #{tpu_custom_call.1} parent=1 // pred_region
      _
    $region17: #{tpu_custom_call.1} parent=1 // pred_fallthru
      _
    %46 = vsyncpa [#allocation3], 1

</llo_original>
